<compile_context>
chip_gen: v5e
topology: v5e:2x2
jax: 0.10.0
libtpu: 0.0.40
codegen_flags: <defaults>
</compile_context>

<pallas_src>
import functools

import jax
import jax.numpy as jnp
from jax.experimental import pallas as pl
from jax.experimental.pallas import tpu as pltpu


def _round_up(x, m):
    return ((x + m - 1) // m) * m


def _cdiv(a, b):
    return -(-a // b)


def _choose_tile(hw, halo, cap):
    """Pick a lane-tile size T (multiple of 128, >= halo, <= ~cap)."""
    cap = max(cap, halo)
    # Fast path: a tile that divides HW exactly (no output padding / no final
    # slice copy).  cap is a power-of-two multiple of 128 in the common case.
    c = cap
    while c >= 128:
        if c >= halo and hw % c == 0:
            return c
        c //= 2
    # Ragged fallback: pad HW up to a multiple of T (pad region is discarded).
    if hw >= 1024:
        t = min(_round_up(hw, 1024), _round_up(cap, 1024))
    else:
        t = _round_up(hw, 128)
    return max(t, halo)


def _si_kernel(xm_ref, xh_ref, edge_ref, w_ref, out_ref, band_ref, xcol_ref,
               *, img_w, t, halo, ch):
    """One output tile: out[C, T] = Wcomb[C, 10] @ im2col(x)[10, T]."""
    n_chunks = t // ch

    # 1) Assemble the contiguous source band: this tile's T lanes plus HALO
    #    lanes of lookahead from the next block (taps reach up to 2*W+2 ahead).
    #    Chunked copies keep live values small (<= ch/128 vregs each).
    for ci in range(n_chunks):
        lo = ci * ch
        band_ref[0, lo:lo + ch] = xm_ref[0, 0, 0, lo:lo + ch]
    band_ref[0, t:t + halo] = xh_ref[0, 0, 0, 0:halo]

    # 2) In-kernel im2col: 9 shifted taps + a constant ones row (bias).
    for ci in range(n_chunks):
        lo = ci * ch
        code = edge_ref[0, lo:lo + ch]        # 0: col==0, 2: col==W-1, else 1
        left_ok = code > 0.5                  # image column != 0
        right_ok = code < 1.5                 # image column != W-1
        k = 0
        for ky in range(3):
            for kx in range(3):
                off = ky * img_w + kx         # static lane offset in [0, 2W+2]
                tap = band_ref[0, lo + off:lo + off + ch]
                if kx == 0:
                    tap = jnp.where(left_ok, tap, 0.0)
                elif kx == 2:
                    tap = jnp.where(right_ok, tap, 0.0)
                xcol_ref[k, lo:lo + ch] = tap
                k += 1
        xcol_ref[9, lo:lo + ch] = jnp.ones((ch,), jnp.float32)  # bias row

    # 3) Single fused MXU matmul (+ folded bias).  HIGHEST precision is hidden
    #    under the HBM pipeline (kernel is memory bound).
    out_ref[0] = jnp.dot(w_ref[...], xcol_ref[...],
                         preferred_element_type=jnp.float32,
                         precision=jax.lax.Precision.HIGHEST)


@jax.jit
def si_forward(x_nchw, w_pre, w_conv, b_conv):
    n, cin, h, w = x_nchw.shape
    assert cin == 1, "SI.preConv expects a single input channel"
    assert w >= 2, "kernel's column-edge masking assumes W >= 2"
    feats = w_pre.shape[0]                                   # nFeats
    hw = h * w

    # ---- tiling ------------------------------------------------------------
    halo = _round_up(2 * w + 3, 128)                         # tap lookahead
    if halo > 1024:
        halo = _round_up(halo, 1024)
    cap = 16384                                              # lane-tile cap
    while cap > 1024 and 2 * feats * cap * 4 > (8 << 20):    # keep out blocks
        cap //= 2                                            # modest in VMEM
    t = _choose_tile(hw, halo, cap)
    if n * _cdiv(hw, t) < 2 and t > 128:                     # v7x: 2 TCs need
        t2 = _choose_tile(hw, halo, max(128, t // 2))        # >= 2 grid steps
        if _cdiv(hw, t2) >= 2:
            t = t2
    n_tiles = _cdiv(hw, t)
    hw_pad = n_tiles * t
    ch = 128                                                 # tap chunk width
    for cand in (1024, 512, 256):
        if t % cand == 0:
            ch = cand
            break

    # ---- lane-dense source stream (rows zero-padded, flattened) ------------
    # xsrc[s] = 0, rows_padded_image[s - 1] for s >= 1; taps of output pixel l
    # live at xsrc[l + ky*W + kx], ky,kx in {0,1,2}.
    xrp = jnp.pad(x_nchw[:, 0].astype(jnp.float32), ((0, 0), (1, 1), (0, 0)))
    xrp = xrp.reshape(n, (h + 2) * w)
    lsrc = (n_tiles + 1) * t                                 # +1 halo block
    tail = lsrc - (h + 2) * w - 1
    xsrc = jnp.pad(xrp, ((0, 0), (1, tail))).reshape(n, n_tiles + 1, 1, t)

    # Column-edge code (shared across batch): 0 -> col 0, 2 -> col W-1, 1 else.
    col = jnp.arange(hw_pad, dtype=jnp.int32) % w
    edge = jnp.where(col == 0, 0.0,
                     jnp.where(col == w - 1, 2.0, 1.0)).astype(jnp.float32)
    edge = edge.reshape(1, hw_pad)

    # Fused weights: [C, 10] = [(I + W1x1) @ W3x3 | bias]  (tiny, exact f32).
    wpre = w_pre.reshape(feats, 9).astype(jnp.float32)
    wcv = w_conv.reshape(feats, feats).astype(jnp.float32)
    wfused = jnp.matmul(jnp.eye(feats, dtype=jnp.float32) + wcv, wpre,
                        precision=jax.lax.Precision.HIGHEST)        # [C, 9]
    wcomb = jnp.concatenate(
        [wfused, b_conv.reshape(feats, 1).astype(jnp.float32)], axis=1)  # [C,10]

    kernel = functools.partial(_si_kernel, img_w=w, t=t, halo=halo, ch=ch)

    out = pl.pallas_call(
        kernel,
        # NOTE: output stays f32 (module semantics); switch to bf16 here if the
        # consumer tolerates it - it halves ~2/3 of the kernel's HBM traffic.
        out_shape=jax.ShapeDtypeStruct((n, feats, hw_pad), jnp.float32),
        grid_spec=pltpu.PrefetchScalarGridSpec(
            num_scalar_prefetch=0,
            grid=(n, n_tiles),
            in_specs=[
                # main block of the source stream
                pl.BlockSpec((1, 1, 1, t), lambda i, j: (i, j, 0, 0)),
                # next block (halo lookahead) of the same array
                pl.BlockSpec((1, 1, 1, t), lambda i, j: (i, j + 1, 0, 0)),
                # column-edge code
                pl.BlockSpec((1, t), lambda i, j: (0, j)),
                # fused weights + bias column (resident)
                pl.BlockSpec((feats, 10), lambda i, j: (0, 0)),
            ],
            out_specs=pl.BlockSpec((1, feats, t), lambda i, j: (i, 0, j)),
            scratch_shapes=[
                pltpu.VMEM((1, t + halo), jnp.float32),   # source band
                pltpu.VMEM((10, t), jnp.float32),         # im2col tile
            ],
        ),
        compiler_params=pltpu.CompilerParams(
            dimension_semantics=("parallel", "parallel"),
            vmem_limit_bytes=40 * 1024 * 1024,
        ),
    )(xsrc, xsrc, edge, wcomb)

    if hw_pad != hw:
        out = out[:, :, :hw]        # ragged HW: drop pad lanes (extra copy)
    # [N, C, HW] is already NCHW-ordered; this reshape is free (no transpose).
    return out.reshape(n, feats, h, w)


def si_reference(x, w_pre, w_conv, b_conv):
    # Pure-JAX reference of the same forward (PRB treated as identity).
    dn = ("NCHW", "OIHW", "NCHW")
    res = jax.lax.conv_general_dilated(x, w_pre, (1, 1), "SAME",
                                       dimension_numbers=dn,
                                       precision=jax.lax.Precision.HIGHEST)
    y = jax.lax.conv_general_dilated(res, w_conv, (1, 1), "SAME",
                                     dimension_numbers=dn,
                                     precision=jax.lax.Precision.HIGHEST)
    y = y + b_conv[None, :, None, None]
    return res + y


if __name__ == "__main__":
    # Small shapes consistent with the module: batch=2, 1 input channel,
    # 16x16 spatial, nFeats=32.
    N, H, W = 2, 16, 16
    nFeats = 32

    key = jax.random.PRNGKey(0)
    kx, k1, k2, k3 = jax.random.split(key, 4)

    x = jax.random.normal(kx, (N, 1, H, W), dtype=jnp.float32)
    # Deterministic synthetic parameters (not a checkpoint).
    w_pre = jax.random.normal(k1, (nFeats, 1, 3, 3), dtype=jnp.float32) * 0.1
    w_conv = jax.random.normal(k2, (nFeats, nFeats, 1, 1), dtype=jnp.float32) * 0.1
    b_conv = jax.random.normal(k3, (nFeats,), dtype=jnp.float32) * 0.1

    out = si_forward(x, w_pre, w_conv, b_conv)
    jax.block_until_ready(out)

    ref = si_reference(x, w_pre, w_conv, b_conv)
    assert out.shape == (N, nFeats, H, W)
    # Everything (in-kernel dot included) runs at HIGHEST precision, so the
    # tolerance can be tight.
    assert jnp.allclose(out, ref, atol=1e-4, rtol=1e-4), \
        float(jnp.max(jnp.abs(out - ref)))

    print("KERNEL_OK")
</pallas_src>

<mosaic_0001>
module attributes {stable_mosaic.version = 11 : i64} {
  func.func @_si_kernel(%arg0: i32, %arg1: i32, %arg2: memref<1x1x1x256xf32, #tpu.memory_space<vmem>>, %arg3: memref<1x1x1x256xf32, #tpu.memory_space<vmem>>, %arg4: memref<1x256xf32, #tpu.memory_space<vmem>>, %arg5: memref<32x10xf32, #tpu.memory_space<vmem>>, %arg6: memref<1x32x256xf32, #tpu.memory_space<vmem>>, %arg7: memref<1x384xf32, #tpu.memory_space<vmem>>, %arg8: memref<10x256xf32, #tpu.memory_space<vmem>>) attributes {dimension_semantics = [#tpu.dimension_semantics<parallel>, #tpu.dimension_semantics<parallel>], iteration_bounds = array<i64: 2, 1>, scalar_prefetch = 0 : i64, scratch_operands = 2 : i64, tpu.core_type = #tpu.core_type<tc>, window_params = [{transform_indices = @transform_0, window_bounds = array<i64: 1, 1, 1, 256>}, {transform_indices = @transform_1, window_bounds = array<i64: 1, 1, 1, 256>}, {transform_indices = @transform_2, window_bounds = array<i64: 1, 256>}, {pipeline_mode = #tpu.pipeline_mode<synchronous>, transform_indices = @transform_3, window_bounds = array<i64: 32, 10>}, {transform_indices = @transform_4, window_bounds = array<i64: 1, 32, 256>}]} {
    %c0 = arith.constant 0 : index
    %c0_0 = arith.constant 0 : index
    %c0_1 = arith.constant 0 : index
    %c0_2 = arith.constant 0 : index
    %0 = vector.load %arg2[%c0, %c0_0, %c0_1, %c0_2] : memref<1x1x1x256xf32, #tpu.memory_space<vmem>>, vector<1x1x1x256xf32>
    %1 = vector.shape_cast %0 : vector<1x1x1x256xf32> to vector<256xf32>
    %c0_3 = arith.constant 0 : index
    %c0_4 = arith.constant 0 : index
    %2 = vector.load %arg7[%c0_3, %c0_4] : memref<1x384xf32, #tpu.memory_space<vmem>>, vector<1x256xf32>
    %3 = vector.shape_cast %2 : vector<1x256xf32> to vector<256xf32>
    %4 = vector.shape_cast %1 : vector<256xf32> to vector<1x256xf32>
    tpu.vector_store %arg7[%c0_3, %c0_4], %4 {strides = array<i32>} : memref<1x384xf32, #tpu.memory_space<vmem>>, vector<1x256xf32>,
    %c0_5 = arith.constant 0 : index
    %c0_6 = arith.constant 0 : index
    %c0_7 = arith.constant 0 : index
    %c0_8 = arith.constant 0 : index
    %5 = vector.load %arg3[%c0_5, %c0_6, %c0_7, %c0_8] : memref<1x1x1x256xf32, #tpu.memory_space<vmem>>, vector<1x1x1x128xf32>
    %6 = vector.shape_cast %5 : vector<1x1x1x128xf32> to vector<128xf32>
    %c0_9 = arith.constant 0 : index
    %c256 = arith.constant 256 : index
    %7 = vector.load %arg7[%c0_9, %c256] : memref<1x384xf32, #tpu.memory_space<vmem>>, vector<1x128xf32>
    %8 = vector.shape_cast %7 : vector<1x128xf32> to vector<128xf32>
    %9 = vector.shape_cast %6 : vector<128xf32> to vector<1x128xf32>
    tpu.vector_store %arg7[%c0_9, %c256], %9 {strides = array<i32>} : memref<1x384xf32, #tpu.memory_space<vmem>>, vector<1x128xf32>,
    %c0_10 = arith.constant 0 : index
    %c0_11 = arith.constant 0 : index
    %10 = vector.load %arg4[%c0_10, %c0_11] : memref<1x256xf32, #tpu.memory_space<vmem>>, vector<1x256xf32>
    %11 = vector.shape_cast %10 : vector<1x256xf32> to vector<256xf32>
    %cst = arith.constant 5.000000e-01 : f32
    %12 = vector.broadcast %cst : f32 to vector<256xf32>
    %13 = arith.cmpf ogt, %11, %12 : vector<256xf32>
    %cst_12 = arith.constant 1.500000e+00 : f32
    %14 = vector.broadcast %cst_12 : f32 to vector<256xf32>
    %15 = arith.cmpf olt, %11, %14 : vector<256xf32>
    %c0_13 = arith.constant 0 : index
    %c0_14 = arith.constant 0 : index
    %16 = vector.load %arg7[%c0_13, %c0_14] : memref<1x384xf32, #tpu.memory_space<vmem>>, vector<1x256xf32>
    %17 = vector.shape_cast %16 : vector<1x256xf32> to vector<256xf32>
    %cst_15 = arith.constant 0.000000e+00 : f32
    %18 = vector.broadcast %cst_15 : f32 to vector<256xf32>
    %19 = arith.select %13, %17, %18 : vector<256xi1>, vector<256xf32>
    %c0_16 = arith.constant 0 : index
    %c0_17 = arith.constant 0 : index
    %20 = vector.load %arg8[%c0_16, %c0_17] : memref<10x256xf32, #tpu.memory_space<vmem>>, vector<1x256xf32>
    %21 = vector.shape_cast %20 : vector<1x256xf32> to vector<256xf32>
    %22 = vector.shape_cast %19 : vector<256xf32> to vector<1x256xf32>
    tpu.vector_store %arg8[%c0_16, %c0_17], %22 {strides = array<i32>} : memref<10x256xf32, #tpu.memory_space<vmem>>, vector<1x256xf32>,
    %c0_18 = arith.constant 0 : index
    %c1 = arith.constant 1 : index
    %23 = vector.load %arg7[%c0_18, %c1] : memref<1x384xf32, #tpu.memory_space<vmem>>, vector<1x256xf32>
    %24 = vector.shape_cast %23 : vector<1x256xf32> to vector<256xf32>
    %c1_19 = arith.constant 1 : index
    %c0_20 = arith.constant 0 : index
    %25 = vector.load %arg8[%c1_19, %c0_20] : memref<10x256xf32, #tpu.memory_space<vmem>>, vector<1x256xf32>
    %26 = vector.shape_cast %25 : vector<1x256xf32> to vector<256xf32>
    %27 = vector.shape_cast %24 : vector<256xf32> to vector<1x256xf32>
    tpu.vector_store %arg8[%c1_19, %c0_20], %27 {strides = array<i32>} : memref<10x256xf32, #tpu.memory_space<vmem>>, vector<1x256xf32>,
    %c0_21 = arith.constant 0 : index
    %c2 = arith.constant 2 : index
    %28 = vector.load %arg7[%c0_21, %c2] : memref<1x384xf32, #tpu.memory_space<vmem>>, vector<1x256xf32>
    %29 = vector.shape_cast %28 : vector<1x256xf32> to vector<256xf32>
    %cst_22 = arith.constant 0.000000e+00 : f32
    %30 = vector.broadcast %cst_22 : f32 to vector<256xf32>
    %31 = arith.select %15, %29, %30 : vector<256xi1>, vector<256xf32>
    %c2_23 = arith.constant 2 : index
    %c0_24 = arith.constant 0 : index
    %32 = vector.load %arg8[%c2_23, %c0_24] : memref<10x256xf32, #tpu.memory_space<vmem>>, vector<1x256xf32>
    %33 = vector.shape_cast %32 : vector<1x256xf32> to vector<256xf32>
    %34 = vector.shape_cast %31 : vector<256xf32> to vector<1x256xf32>
    tpu.vector_store %arg8[%c2_23, %c0_24], %34 {strides = array<i32>} : memref<10x256xf32, #tpu.memory_space<vmem>>, vector<1x256xf32>,
    %c0_25 = arith.constant 0 : index
    %c16 = arith.constant 16 : index
    %35 = vector.load %arg7[%c0_25, %c16] : memref<1x384xf32, #tpu.memory_space<vmem>>, vector<1x256xf32>
    %36 = vector.shape_cast %35 : vector<1x256xf32> to vector<256xf32>
    %cst_26 = arith.constant 0.000000e+00 : f32
    %37 = vector.broadcast %cst_26 : f32 to vector<256xf32>
    %38 = arith.select %13, %36, %37 : vector<256xi1>, vector<256xf32>
    %c3 = arith.constant 3 : index
    %c0_27 = arith.constant 0 : index
    %39 = vector.load %arg8[%c3, %c0_27] : memref<10x256xf32, #tpu.memory_space<vmem>>, vector<1x256xf32>
    %40 = vector.shape_cast %39 : vector<1x256xf32> to vector<256xf32>
    %41 = vector.shape_cast %38 : vector<256xf32> to vector<1x256xf32>
    tpu.vector_store %arg8[%c3, %c0_27], %41 {strides = array<i32>} : memref<10x256xf32, #tpu.memory_space<vmem>>, vector<1x256xf32>,
    %c0_28 = arith.constant 0 : index
    %c17 = arith.constant 17 : index
    %42 = vector.load %arg7[%c0_28, %c17] : memref<1x384xf32, #tpu.memory_space<vmem>>, vector<1x256xf32>
    %43 = vector.shape_cast %42 : vector<1x256xf32> to vector<256xf32>
    %c4 = arith.constant 4 : index
    %c0_29 = arith.constant 0 : index
    %44 = vector.load %arg8[%c4, %c0_29] : memref<10x256xf32, #tpu.memory_space<vmem>>, vector<1x256xf32>
    %45 = vector.shape_cast %44 : vector<1x256xf32> to vector<256xf32>
    %46 = vector.shape_cast %43 : vector<256xf32> to vector<1x256xf32>
    tpu.vector_store %arg8[%c4, %c0_29], %46 {strides = array<i32>} : memref<10x256xf32, #tpu.memory_space<vmem>>, vector<1x256xf32>,
    %c0_30 = arith.constant 0 : index
    %c18 = arith.constant 18 : index
    %47 = vector.load %arg7[%c0_30, %c18] : memref<1x384xf32, #tpu.memory_space<vmem>>, vector<1x256xf32>
    %48 = vector.shape_cast %47 : vector<1x256xf32> to vector<256xf32>
    %cst_31 = arith.constant 0.000000e+00 : f32
    %49 = vector.broadcast %cst_31 : f32 to vector<256xf32>
    %50 = arith.select %15, %48, %49 : vector<256xi1>, vector<256xf32>
    %c5 = arith.constant 5 : index
    %c0_32 = arith.constant 0 : index
    %51 = vector.load %arg8[%c5, %c0_32] : memref<10x256xf32, #tpu.memory_space<vmem>>, vector<1x256xf32>
    %52 = vector.shape_cast %51 : vector<1x256xf32> to vector<256xf32>
    %53 = vector.shape_cast %50 : vector<256xf32> to vector<1x256xf32>
    tpu.vector_store %arg8[%c5, %c0_32], %53 {strides = array<i32>} : memref<10x256xf32, #tpu.memory_space<vmem>>, vector<1x256xf32>,
    %c0_33 = arith.constant 0 : index
    %c32 = arith.constant 32 : index
    %54 = vector.load %arg7[%c0_33, %c32] : memref<1x384xf32, #tpu.memory_space<vmem>>, vector<1x256xf32>
    %55 = vector.shape_cast %54 : vector<1x256xf32> to vector<256xf32>
    %cst_34 = arith.constant 0.000000e+00 : f32
    %56 = vector.broadcast %cst_34 : f32 to vector<256xf32>
    %57 = arith.select %13, %55, %56 : vector<256xi1>, vector<256xf32>
    %c6 = arith.constant 6 : index
    %c0_35 = arith.constant 0 : index
    %58 = vector.load %arg8[%c6, %c0_35] : memref<10x256xf32, #tpu.memory_space<vmem>>, vector<1x256xf32>
    %59 = vector.shape_cast %58 : vector<1x256xf32> to vector<256xf32>
    %60 = vector.shape_cast %57 : vector<256xf32> to vector<1x256xf32>
    tpu.vector_store %arg8[%c6, %c0_35], %60 {strides = array<i32>} : memref<10x256xf32, #tpu.memory_space<vmem>>, vector<1x256xf32>,
    %c0_36 = arith.constant 0 : index
    %c33 = arith.constant 33 : index
    %61 = vector.load %arg7[%c0_36, %c33] : memref<1x384xf32, #tpu.memory_space<vmem>>, vector<1x256xf32>
    %62 = vector.shape_cast %61 : vector<1x256xf32> to vector<256xf32>
    %c7 = arith.constant 7 : index
    %c0_37 = arith.constant 0 : index
    %63 = vector.load %arg8[%c7, %c0_37] : memref<10x256xf32, #tpu.memory_space<vmem>>, vector<1x256xf32>
    %64 = vector.shape_cast %63 : vector<1x256xf32> to vector<256xf32>
    %65 = vector.shape_cast %62 : vector<256xf32> to vector<1x256xf32>
    tpu.vector_store %arg8[%c7, %c0_37], %65 {strides = array<i32>} : memref<10x256xf32, #tpu.memory_space<vmem>>, vector<1x256xf32>,
    %c0_38 = arith.constant 0 : index
    %c34 = arith.constant 34 : index
    %66 = vector.load %arg7[%c0_38, %c34] : memref<1x384xf32, #tpu.memory_space<vmem>>, vector<1x256xf32>
    %67 = vector.shape_cast %66 : vector<1x256xf32> to vector<256xf32>
    %cst_39 = arith.constant 0.000000e+00 : f32
    %68 = vector.broadcast %cst_39 : f32 to vector<256xf32>
    %69 = arith.select %15, %67, %68 : vector<256xi1>, vector<256xf32>
    %c8 = arith.constant 8 : index
    %c0_40 = arith.constant 0 : index
    %70 = vector.load %arg8[%c8, %c0_40] : memref<10x256xf32, #tpu.memory_space<vmem>>, vector<1x256xf32>
    %71 = vector.shape_cast %70 : vector<1x256xf32> to vector<256xf32>
    %72 = vector.shape_cast %69 : vector<256xf32> to vector<1x256xf32>
    tpu.vector_store %arg8[%c8, %c0_40], %72 {strides = array<i32>} : memref<10x256xf32, #tpu.memory_space<vmem>>, vector<1x256xf32>,
    %cst_41 = arith.constant 1.000000e+00 : f32
    %73 = vector.broadcast %cst_41 : f32 to vector<256xf32>
    %c9 = arith.constant 9 : index
    %c0_42 = arith.constant 0 : index
    %74 = vector.load %arg8[%c9, %c0_42] : memref<10x256xf32, #tpu.memory_space<vmem>>, vector<1x256xf32>
    %75 = vector.shape_cast %74 : vector<1x256xf32> to vector<256xf32>
    %76 = vector.shape_cast %73 : vector<256xf32> to vector<1x256xf32>
    tpu.vector_store %arg8[%c9, %c0_42], %76 {strides = array<i32>} : memref<10x256xf32, #tpu.memory_space<vmem>>, vector<1x256xf32>,
    %c0_43 = arith.constant 0 : index
    %c0_44 = arith.constant 0 : index
    %77 = vector.load %arg5[%c0_43, %c0_44] : memref<32x10xf32, #tpu.memory_space<vmem>>, vector<32x10xf32>
    %c0_45 = arith.constant 0 : index
    %c0_46 = arith.constant 0 : index
    %78 = vector.load %arg8[%c0_45, %c0_46] : memref<10x256xf32, #tpu.memory_space<vmem>>, vector<10x256xf32>
    %cst_47 = arith.constant dense<0.000000e+00> : vector<32x256xf32>
    %79 = tpu.matmul %77, %78, %cst_47 {dimension_numbers = #tpu.dot_dimension_numbers<[1], [0], [0], [1], [0, 0, 1, 1], [], []>, precision = #tpu.contract_precision<fp32>} : vector<32x10xf32>, vector<10x256xf32>, vector<32x256xf32> -> vector<32x256xf32>
    %c0_48 = arith.constant 0 : index
    %c0_49 = arith.constant 0 : index
    %c0_50 = arith.constant 0 : index
    %80 = vector.load %arg6[%c0_48, %c0_49, %c0_50] : memref<1x32x256xf32, #tpu.memory_space<vmem>>, vector<1x32x256xf32>
    %81 = vector.shape_cast %80 : vector<1x32x256xf32> to vector<32x256xf32>
    %82 = vector.shape_cast %79 : vector<32x256xf32> to vector<1x32x256xf32>
    tpu.vector_store %arg6[%c0_48, %c0_49, %c0_50], %82 {strides = array<i32>} : memref<1x32x256xf32, #tpu.memory_space<vmem>>, vector<1x32x256xf32>,
    return
  }
  func.func @transform_0(%arg0: i32, %arg1: i32) -> (i32, i32, i32, i32) {
    %c0_i32 = arith.constant 0 : i32
    %c0_i32_0 = arith.constant 0 : i32
    %c0_i32_1 = arith.constant 0 : i32
    return %arg0, %arg1, %c0_i32, %c0_i32_0 : i32, i32, i32, i32
  }
  func.func @transform_1(%arg0: i32, %arg1: i32) -> (i32, i32, i32, i32) {
    %c1_i32 = arith.constant 1 : i32
    %0 = arith.addi %arg1, %c1_i32 : i32
    %c0_i32 = arith.constant 0 : i32
    %c0_i32_0 = arith.constant 0 : i32
    %c0_i32_1 = arith.constant 0 : i32
    return %arg0, %0, %c0_i32, %c0_i32_0 : i32, i32, i32, i32
  }
  func.func @transform_2(%arg0: i32, %arg1: i32) -> (i32, i32) {
    %c0_i32 = arith.constant 0 : i32
    %c0_i32_0 = arith.constant 0 : i32
    return %c0_i32, %arg1 : i32, i32
  }
  func.func @transform_3(%arg0: i32, %arg1: i32) -> (i32, i32) {
    %c0_i32 = arith.constant 0 : i32
    %c0_i32_0 = arith.constant 0 : i32
    %c0_i32_1 = arith.constant 0 : i32
    return %c0_i32, %c0_i32_0 : i32, i32
  }
  func.func @transform_4(%arg0: i32, %arg1: i32) -> (i32, i32, i32) {
    %c0_i32 = arith.constant 0 : i32
    %c0_i32_0 = arith.constant 0 : i32
    return %arg0, %c0_i32, %arg1 : i32, i32, i32
  }
}

</mosaic_0001>

<llo_original>
// kernel: si_forward.1
$region0: #{si_forward.1}
  #allocation0 [shape = 'u32[]', space=smem, size = 0x4, offset = 0x4, fixed_abs, tag = 'smem constant byte address 0x4 - core index']
  #allocation1 [shape = 'u32[72,128]{1,0:T(1,128)}', space=vmem, size = 0x9000, scoped, tag = 'internal scratch']
  #allocation2 [shape = 'f32[1,384]{1,0:T(1,128)}', space=vmem, size = 0x600, scoped, tag = 'scratch operand']
  #allocation3 [shape = 'f32[10,256]{1,0:T(8,128)}', space=vmem, size = 0x4000, scoped, tag = 'scratch operand']
  %s0 = inlined_call_operand.vmem [shape: f32[2,2,1,256], index: 0, kind: input, shape index: {}, may-alias: {0,1}]
  %s1 = inlined_call_operand.vmem [shape: f32[2,2,1,256], index: 1, kind: input, shape index: {}, may-alias: {0,1}]
  %s2 = inlined_call_operand.vmem [shape: f32[1,256], index: 2, kind: input, shape index: {}]
  %s3 = inlined_call_operand.vmem [shape: f32[32,10], index: 3, kind: input, shape index: {}]
  %s4 = inlined_call_operand.vmem [shape: f32[2,32,256], index: 4, kind: output, shape index: {}]
  %s5 = sld [smem:[#allocation0]]
  $region49: #{si_forward.1} parent=0
    _
  %s7 = ssub.s32 1, %s5
  %s8 = scalar_select 0, %s7, %s5
  loop: start=0, step=1, limit=4
  $region2: #{si_forward.1} parent=0 // loop_pre_header
    _
  $region3: #{si_forward.1} parent=0 // loop_header
    %s10 = sphi 0, %s14
    %p11 = scmp.ge.s32.totalorder %s10, 4
    %s17 = sphi 0, %s29
    %s18 = sphi 0, %s25
    %s19 = sphi 0, %s17
    %s20 = sphi 0, %s18
    %s21 = sphi 0, %s19
    %s22 = sphi 0, %s20
    %s34 = sphi 0, %s36
    %s37 = sphi 0, %s34
    %s38 = sphi 0, %s37
    %s54 = sphi 0, %s38
    %s64 = sphi 0, %s66
    %s67 = sphi 0, %s64
    %s68 = sphi 0, %s67
    %s84 = sphi 0, %s68
    %s90 = sphi 0, %s92
    %s93 = sphi 0, %s90
    %s94 = sphi 0, %s93
    %s110 = sphi 0, %s94
    %s114 = sphi 0, %s114
    %s116 = sphi 0, %s114
    %s117 = sphi 0, %s116
    %s131 = sphi 0, %s117
    %s139 = sphi 0, %s141
    %s142 = sphi 0, %s139
    %s143 = sphi 0, %s142
    %s159 = sphi 0, %s143
  $region4: #{si_forward.1} parent=0 // loop_header_branch
    %13 = sbr.rel (%p11) target = $region8
  $region5: #{si_forward.1} parent=0 // loop_body
    %s15 = ssub.s32 %s10, 1
    %s16 = ssub.s32 %s10, 2
    %s23 = sadd.s32 1, %s18
    %p24 = scmp.ge.s32.totalorder %s23, 1
    %s25 = scalar_select %p24, 0, %s23
    %s26 = sadd.s32 1, %s17
    %s27 = scalar_select %p24, %s26, %s17
    %p28 = scmp.ge.s32.totalorder %s27, 2
    %s29 = scalar_select %p28, 0, %s27
    %s30 = ssub.s32 %s17, %s29
    %s31 = ssub.s32 %s18, %s25
    %s32 = sor.u32 %s30, %s31
    %p33 = scmp.eq.s32.totalorder %s32, 0
    %s35 = sadd.s32 %s34, 1
    %s36 = scalar_select %p33, %s34, %s35
    %p39 = pneg %p33
    %p40 = scmp.eq.s32.totalorder %s10, 1
    %p41 = por %p39, %p40
    %p42 = scmp.ne.s32.totalorder %s34, %s37
    %p43 = scmp.eq.s32.totalorder %s10, 0
    %p44 = por %p42, %p43
    %p45 = scmp.ne.s32.totalorder %s34, %s37
    %p46 = scmp.eq.s32.totalorder %s15, 1
    %p47 = por %p45, %p46
    %p48 = scmp.ne.s32.totalorder %s37, %s38
    %p49 = scmp.eq.s32.totalorder %s15, 0
    %p50 = por %p48, %p49
    %p51 = scmp.ne.s32.totalorder %s37, %s38
    %p52 = scmp.eq.s32.totalorder %s16, 1
    %p53 = por %p51, %p52
    %p55 = scmp.ne.s32.totalorder %s38, %s54
    %p56 = scmp.eq.s32.totalorder %s16, 0
    %p57 = por %p55, %p56
    %s58 = sadd.s32 %s18, 1
    %s59 = sadd.s32 %s25, 1
    %s60 = ssub.s32 %s17, %s29
    %s61 = ssub.s32 %s58, %s59
    %s62 = sor.u32 %s60, %s61
    %p63 = scmp.eq.s32.totalorder %s62, 0
    %s65 = sadd.s32 %s64, 1
    %s66 = scalar_select %p63, %s64, %s65
    %p69 = pneg %p63
    %p70 = scmp.eq.s32.totalorder %s10, 1
    %p71 = por %p69, %p70
    %p72 = scmp.ne.s32.totalorder %s64, %s67
    %p73 = scmp.eq.s32.totalorder %s10, 0
    %p74 = por %p72, %p73
    %p75 = scmp.ne.s32.totalorder %s64, %s67
    %p76 = scmp.eq.s32.totalorder %s15, 1
    %p77 = por %p75, %p76
    %p78 = scmp.ne.s32.totalorder %s67, %s68
    %p79 = scmp.eq.s32.totalorder %s15, 0
    %p80 = por %p78, %p79
    %p81 = scmp.ne.s32.totalorder %s67, %s68
    %p82 = scmp.eq.s32.totalorder %s16, 1
    %p83 = por %p81, %p82
    %p85 = scmp.ne.s32.totalorder %s68, %s84
    %p86 = scmp.eq.s32.totalorder %s16, 0
    %p87 = por %p85, %p86
    %s88 = ssub.s32 %s18, %s25
    %p89 = scmp.eq.s32.totalorder %s88, 0
    %s91 = sadd.s32 %s90, 1
    %s92 = scalar_select %p89, %s90, %s91
    %p95 = pneg %p89
    %p96 = scmp.eq.s32.totalorder %s10, 1
    %p97 = por %p95, %p96
    %p98 = scmp.ne.s32.totalorder %s90, %s93
    %p99 = scmp.eq.s32.totalorder %s10, 0
    %p100 = por %p98, %p99
    %p101 = scmp.ne.s32.totalorder %s90, %s93
    %p102 = scmp.eq.s32.totalorder %s15, 1
    %p103 = por %p101, %p102
    %p104 = scmp.ne.s32.totalorder %s93, %s94
    %p105 = scmp.eq.s32.totalorder %s15, 0
    %p106 = por %p104, %p105
    %p107 = scmp.ne.s32.totalorder %s93, %s94
    %p108 = scmp.eq.s32.totalorder %s16, 1
    %p109 = por %p107, %p108
    %p111 = scmp.ne.s32.totalorder %s94, %s110
    %p112 = scmp.eq.s32.totalorder %s16, 0
    %p113 = por %p111, %p112
    %s115 = sadd.s32 %s114, 1
    %p118 = scmp.eq.s32.totalorder %s10, 1
    %p119 = scmp.ne.s32.totalorder %s114, %s116
    %p120 = scmp.eq.s32.totalorder %s10, 0
    %p121 = por %p119, %p120
    %p122 = scmp.ne.s32.totalorder %s114, %s116
    %p123 = scmp.eq.s32.totalorder %s15, 1
    %p124 = por %p122, %p123
    %p125 = scmp.ne.s32.totalorder %s116, %s117
    %p126 = scmp.eq.s32.totalorder %s15, 0
    %p127 = por %p125, %p126
    %p128 = scmp.ne.s32.totalorder %s116, %s117
    %p129 = scmp.eq.s32.totalorder %s16, 1
    %p130 = por %p128, %p129
    %p132 = scmp.ne.s32.totalorder %s117, %s131
    %p133 = scmp.eq.s32.totalorder %s16, 0
    %p134 = por %p132, %p133
    %s135 = ssub.s32 %s17, %s29
    %s136 = ssub.s32 %s18, %s25
    %s137 = sor.u32 %s135, %s136
    %p138 = scmp.eq.s32.totalorder %s137, 0
    %s140 = sadd.s32 %s139, 1
    %s141 = scalar_select %p138, %s139, %s140
    %p144 = pneg %p138
    %p145 = scmp.eq.s32.totalorder %s10, 1
    %p146 = por %p144, %p145
    %p147 = scmp.ne.s32.totalorder %s139, %s142
    %p148 = scmp.eq.s32.totalorder %s10, 0
    %p149 = por %p147, %p148
    %p150 = scmp.ne.s32.totalorder %s139, %s142
    %p151 = scmp.eq.s32.totalorder %s15, 1
    %p152 = por %p150, %p151
    %p153 = scmp.ne.s32.totalorder %s142, %s143
    %p154 = scmp.eq.s32.totalorder %s15, 0
    %p155 = por %p153, %p154
    %p156 = scmp.ne.s32.totalorder %s142, %s143
    %p157 = scmp.eq.s32.totalorder %s16, 1
    %p158 = por %p156, %p157
    %p160 = scmp.ne.s32.totalorder %s143, %s159
    %p161 = scmp.eq.s32.totalorder %s16, 0
    %p162 = por %p160, %p161
    %p163 = scmp.le.s32.totalorder 1, %s10
    %p164 = scmp.lt.s32.totalorder %s10, 3
    %p165 = pnand %p163, %p164
    %p166 = pneg %p165
    // Predicated region
    $region9: #{si_forward.1} parent=5 // pred_check
      _
    $region10: #{si_forward.1} parent=5 // pred_check_branch
      %168 = sbr.rel (%p165) target = $region12
    $region11: #{si_forward.1} parent=5 // pred_region
      %s169 = ssub.s32 %s10, 1
      // Predicated region
      $region13: #{si_forward.1} parent=11 // pred_check
        %p170 = pneg %p106
      $region14: #{si_forward.1} parent=11 // pred_check_branch
        %172 = sbr.rel (%p170) target = $region16
      $region15: #{si_forward.1} parent=11 // pred_region
        %s173 = smul.u32 2, %s20
        %p174 = scmp.lt.s32.totalorder %s173, 1
        %s175 = scalar_select %p174, %s173, 1
        %s176 = scalar_lea.vmem %s2, %s175
        %s177 = smul.u32 2, %s20
      $region16: #{si_forward.1} parent=11 // pred_fallthru
        _
      // Predicated region
      $region17: #{si_forward.1} parent=11 // pred_check
        %p178 = pneg %p127
      $region18: #{si_forward.1} parent=11 // pred_check_branch
        %180 = sbr.rel (%p178) target = $region20
      $region19: #{si_forward.1} parent=11 // pred_region
        _
      $region20: #{si_forward.1} parent=11 // pred_fallthru
        _
    $region12: #{si_forward.1} parent=5 // pred_fallthru
      _
    %p181 = scmp.lt.s32.totalorder %s10, 2
    // Predicated region
    $region21: #{si_forward.1} parent=5 // pred_check
      %p182 = pneg %p181
    $region22: #{si_forward.1} parent=5 // pred_check_branch
      %184 = sbr.rel (%p182) target = $region24
    $region23: #{si_forward.1} parent=5 // pred_region
      // Predicated region
      $region25: #{si_forward.1} parent=23 // pred_check
        %p185 = pneg %p44
      $region26: #{si_forward.1} parent=23 // pred_check_branch
        %187 = sbr.rel (%p185) target = $region28
      $region27: #{si_forward.1} parent=23 // pred_region
        %p188 = scmp.lt.s32.totalorder %s17, 1
        %s189 = scalar_select %p188, %s17, 1
        %p190 = scmp.lt.s32.totalorder %s18, 1
        %s191 = scalar_select %p190, %s18, 1
        %s192 = smul.addr %s191, 2
        %s193 = smul.addr %s189, 4
        %s194 = sadd.s32 %s192, %s193
        %s195 = scalar_lea.vmem %s0, %s194
      $region28: #{si_forward.1} parent=23 // pred_fallthru
        _
      // Predicated region
      $region29: #{si_forward.1} parent=23 // pred_check
        %p196 = pneg %p74
      $region30: #{si_forward.1} parent=23 // pred_check_branch
        %198 = sbr.rel (%p196) target = $region32
      $region31: #{si_forward.1} parent=23 // pred_region
        %s199 = sadd.s32 %s18, 1
        %p200 = scmp.lt.s32.totalorder %s17, 1
        %s201 = scalar_select %p200, %s17, 1
        %p202 = scmp.lt.s32.totalorder %s199, 1
        %s203 = scalar_select %p202, %s199, 1
        %s204 = smul.addr %s203, 2
        %s205 = smul.addr %s201, 4
        %s206 = sadd.s32 %s204, %s205
        %s207 = scalar_lea.vmem %s1, %s206
        %s208 = sadd.s32 %s18, 1
      $region32: #{si_forward.1} parent=23 // pred_fallthru
        _
    $region24: #{si_forward.1} parent=5 // pred_fallthru
      _
    %p209 = scmp.le.s32.totalorder 1, %s10
    %p210 = scmp.lt.s32.totalorder %s10, 3
    %p211 = pnand %p209, %p210
    %p212 = pneg %p211
    // Predicated region
    $region33: #{si_forward.1} parent=5 // pred_check
      _
    $region34: #{si_forward.1} parent=5 // pred_check_branch
      %214 = sbr.rel (%p211) target = $region36
    $region35: #{si_forward.1} parent=5 // pred_region
      %s215 = ssub.s32 %s10, 1
      %p216 = scmp.lt.s32.totalorder %s19, 1
      %s217 = scalar_select %p216, %s19, 1
      %p218 = scmp.lt.s32.totalorder %s20, 1
      %s219 = scalar_select %p218, %s20, 1
      %s220 = smul.addr %s219, 2
      %s221 = smul.addr %s217, 4
      %s222 = sadd.s32 %s220, %s221
      %s223 = scalar_lea.vmem %s0, %s222
      %p224 = pneg %p50
      %p225 = pneg %p47
      %s226 = sadd.s32 %s20, 1
      %p227 = scmp.lt.s32.totalorder %s19, 1
      %s228 = scalar_select %p227, %s19, 1
      %p229 = scmp.lt.s32.totalorder %s226, 1
      %s230 = scalar_select %p229, %s226, 1
      %s231 = smul.addr %s230, 2
      %s232 = smul.addr %s228, 4
      %s233 = sadd.s32 %s231, %s232
      %s234 = scalar_lea.vmem %s1, %s233
      %p235 = pneg %p80
      %p236 = pneg %p77
      %s237 = smul.u32 2, %s20
      %p238 = scmp.lt.s32.totalorder %s237, 1
      %s239 = scalar_select %p238, %s237, 1
      %s240 = scalar_lea.vmem %s2, %s239
      %p241 = pneg %p106
      %p242 = pneg %p103
      %p243 = pneg %p127
      %p244 = pneg %p124
      %p245 = pneg %p155
      %p246 = pneg %p152
      %s247 = smul.u32 2, %s20
      %p248 = scmp.lt.s32.totalorder %s19, 1
      %s249 = scalar_select %p248, %s19, 1
      %p250 = scmp.lt.s32.totalorder %s247, 1
      %s251 = scalar_select %p250, %s247, 1
      %s252 = smul.addr %s249, 8
      %s253 = sadd.s32 %s251, %s252
      %s254 = smul.addr %s253, 8
      %s255 = scalar_lea.vmem %s4, %s254
      %p256 = scmp.lt.s32.totalorder %s19, 1
      %s257 = scalar_select %p256, %s19, 1
      %p258 = scmp.lt.s32.totalorder %s20, 1
      %s259 = scalar_select %p258, %s20, 1
      %s260 = smul.addr %s259, 2
      %s261 = smul.addr %s257, 4
      %s262 = sadd.s32 %s260, %s261
      %s263 = scalar_lea.vmem %s0, %s262
      %s264 = sadd.s32 %s20, 1
      %p265 = scmp.lt.s32.totalorder %s19, 1
      %s266 = scalar_select %p265, %s19, 1
      %p267 = scmp.lt.s32.totalorder %s264, 1
      %s268 = scalar_select %p267, %s264, 1
      %s269 = smul.addr %s268, 2
      %s270 = smul.addr %s266, 4
      %s271 = sadd.s32 %s269, %s270
      %s272 = scalar_lea.vmem %s1, %s271
      %s273 = sadd.s32 %s20, 1
      %s274 = smul.u32 2, %s20
      %p275 = scmp.lt.s32.totalorder %s274, 1
      %s276 = scalar_select %p275, %s274, 1
      %s277 = scalar_lea.vmem %s2, %s276
      %s278 = smul.u32 2, %s20
      %s279 = smul.u32 2, %s20
      %p280 = scmp.lt.s32.totalorder %s19, 1
      %s281 = scalar_select %p280, %s19, 1
      %p282 = scmp.lt.s32.totalorder %s279, 1
      %s283 = scalar_select %p282, %s279, 1
      %s284 = smul.addr %s281, 8
      %s285 = sadd.s32 %s283, %s284
      %s286 = smul.addr %s285, 8
      %s287 = scalar_lea.vmem %s4, %s286
      %s288 = smul.u32 2, %s20
      %v289 = vld [vmem:[%s263] sm:$0x3]
      %v290 = vlaneseq
      %vm291 = vcmp.ge.s32.totalorder %v290, 0
      %vm292 = vcmp.lt.s32.totalorder %v290, 256
      %vm293 = vmand %vm291, %vm292
      %294 = vst.msk [vmem:[#allocation2] sm:$0x3] %vm293, %v289
      %v295 = vld [vmem:[%s272] sm:$0x1]
      %vm296 = vcmp.lt.s32.totalorder %v290, 128
      %vm297 = vmand %vm291, %vm296
      %298 = vst.msk [vmem:[#allocation2 + $0x2] sm:$0x1] %vm297, %v295
      %v299 = vld [vmem:[%s277] sm:$0x3]
      %vm300 = vcmp.gt.f32.partialorder %v299, 0.5
      %vm301 = vcmp.lt.f32.partialorder %v299, 1.5
      %v302 = vld [vmem:[#allocation2] sm:$0x3]
      %v303 = vsel %vm300, %v302, 0.0
      %304 = vst.msk [vmem:[#allocation3] ss:$8 sm:$0x3] %vm293, %v303
      %305 = vst.msk [vmem:[#allocation3] ss:$8 sm:$0x0] %vm293, %v303
      %v306 = vld [vmem:[#allocation2] sm:$0x7]
      %308 = vrot.lane.b32.xlu0 %v306, 127
      %v309 = vpop.permute.xlu0 %308
      %v310 = vrot.slane %v309, 1
      %vm311 = vcmask 1039360
      %v312 = vsel %vm311, %v309, %v310
      %s314 = scalar_lea.vmem [#allocation3], 1
      %315 = vst.msk [vmem:[%s314] ss:$8 sm:$0x3] %vm293, %v312
      %316 = vst.msk [vmem:[%s314] ss:$8 sm:$0x0] %vm293, %v312
      %v317 = vld [vmem:[#allocation2] sm:$0x7]
      %319 = vrot.lane.b32.xlu0 %v317, 126
      %v320 = vpop.permute.xlu0 %319
      %v321 = vrot.slane %v320, 1
      %vm322 = vcmask 1031168
      %v323 = vsel %vm322, %v320, %v321
      %v325 = vsel %vm301, %v323, 0.0
      %s326 = scalar_lea.vmem [#allocation3], 2
      %327 = vst.msk [vmem:[%s326] ss:$8 sm:$0x3] %vm293, %v325
      %328 = vst.msk [vmem:[%s326] ss:$8 sm:$0x0] %vm293, %v325
      %v329 = vld [vmem:[#allocation2] sm:$0x7]
      %331 = vrot.lane.b32.xlu0 %v329, 112
      %v332 = vpop.permute.xlu0 %331
      %v333 = vrot.slane %v332, 1
      %vm334 = vcmask 916480
      %v335 = vsel %vm334, %v332, %v333
      %v337 = vsel %vm300, %v335, 0.0
      %s338 = scalar_lea.vmem [#allocation3], 3
      %339 = vst.msk [vmem:[%s338] ss:$8 sm:$0x3] %vm293, %v337
      %340 = vst.msk [vmem:[%s338] ss:$8 sm:$0x0] %vm293, %v337
      %v341 = vld [vmem:[#allocation2] sm:$0x7]
      %343 = vrot.lane.b32.xlu0 %v341, 111
      %v344 = vpop.permute.xlu0 %343
      %v345 = vrot.slane %v344, 1
      %vm346 = vcmask 908288
      %v347 = vsel %vm346, %v344, %v345
      %s349 = scalar_lea.vmem [#allocation3], 4
      %350 = vst.msk [vmem:[%s349] ss:$8 sm:$0x3] %vm293, %v347
      %351 = vst.msk [vmem:[%s349] ss:$8 sm:$0x0] %vm293, %v347
      %v352 = vld [vmem:[#allocation2] sm:$0x7]
      %354 = vrot.lane.b32.xlu0 %v352, 110
      %v355 = vpop.permute.xlu0 %354
      %v356 = vrot.slane %v355, 1
      %vm357 = vcmask 900096
      %v358 = vsel %vm357, %v355, %v356
      %v360 = vsel %vm301, %v358, 0.0
      %s361 = scalar_lea.vmem [#allocation3], 5
      %362 = vst.msk [vmem:[%s361] ss:$8 sm:$0x3] %vm293, %v360
      %363 = vst.msk [vmem:[%s361] ss:$8 sm:$0x0] %vm293, %v360
      %v364 = vld [vmem:[#allocation2] sm:$0x7]
      %366 = vrot.lane.b32.xlu0 %v364, 96
      %v367 = vpop.permute.xlu0 %366
      %v368 = vrot.slane %v367, 1
      %vm369 = vcmask 785408
      %v370 = vsel %vm369, %v367, %v368
      %v372 = vsel %vm300, %v370, 0.0
      %s373 = scalar_lea.vmem [#allocation3], 6
      %374 = vst.msk [vmem:[%s373] ss:$8 sm:$0x3] %vm293, %v372
      %375 = vst.msk [vmem:[%s373] ss:$8 sm:$0x0] %vm293, %v372
      %v376 = vld [vmem:[#allocation2] sm:$0x7]
      %378 = vrot.lane.b32.xlu0 %v376, 95
      %v379 = vpop.permute.xlu0 %378
      %v380 = vrot.slane %v379, 1
      %vm381 = vcmask 777216
      %v382 = vsel %vm381, %v379, %v380
      %s384 = scalar_lea.vmem [#allocation3], 7
      %385 = vst.msk [vmem:[%s384] ss:$8 sm:$0x3] %vm293, %v382
      %386 = vst.msk [vmem:[%s384] ss:$8 sm:$0x0] %vm293, %v382
      %v387 = vld [vmem:[#allocation2] sm:$0x7]
      %389 = vrot.lane.b32.xlu0 %v387, 94
      %v390 = vpop.permute.xlu0 %389
      %v391 = vrot.slane %v390, 1
      %vm392 = vcmask 769024
      %v393 = vsel %vm392, %v390, %v391
      %v395 = vsel %vm301, %v393, 0.0
      %s396 = scalar_lea.vmem [#allocation3], 16
      %397 = vst.msk [vmem:[%s396] ss:$8 sm:$0x3] %vm293, %v395
      %398 = vst.msk [vmem:[%s396] ss:$8 sm:$0x0] %vm293, %v395
      %s399 = scalar_lea.vmem [#allocation3], 17
      %400 = vst.msk [vmem:[%s399] ss:$8 sm:$0x3] %vm293, 1.0
      %401 = vst.msk [vmem:[%s399] ss:$8 sm:$0x0] %vm293, 1.0
      %v402 = vld [vmem:[%s3] sm:$0xff]
      %v403 = vld [vmem:[%s3 + $0x8] sm:$0xff]
      %v404 = vld [vmem:[%s3 + $0x10] sm:$0xff]
      %v405 = vld [vmem:[%s3 + $0x18] sm:$0xff]
      %v406 = vld [vmem:[#allocation3] sm:$0xff]
      %v407 = vld [vmem:[#allocation3 + $0x8] sm:$0xff]
      %v408 = vld [vmem:[#allocation3 + $0x10] sm:$0x3]
      %v409 = vld [vmem:[#allocation3 + $0x18] sm:$0x3]
      %vm410 = vcmask 80896
      %v412 = vsel %vm410, %v402, 0
      %v415 = vsel %vm410, %v403, 0
      %v418 = vsel %vm410, %v404, 0
      %v421 = vsel %vm410, %v405, 0
      %vm423 = vcmask 1041408
      %v425 = vsel %vm423, %v408, 0
      %v428 = vsel %vm423, %v409, 0
      %430 = vmatpush.msra.mxu0 0.0
      %431 = vmatpush.msra.mxu0 0.0
      %432 = vmatpush.msra.mxu0 0.0
      %433 = vmatpush.msra.mxu0 0.0
      %434 = vmatpush.msra.mxu0 0.0
      %435 = vmatpush.msra.mxu0 0.0
      %436 = vmatpush.msra.mxu0 0.0
      %437 = vmatpush.msra.mxu0 0.0
      %438 = vmatpush.msra.mxu0 0.0
      %439 = vmatpush.msra.mxu0 0.0
      %440 = vmatpush.msra.mxu0 0.0
      %441 = vmatpush.msra.mxu0 0.0
      %442 = vmatpush.msra.mxu0 0.0
      %443 = vmatpush.msra.mxu0 0.0
      %v444 = vand.u32 %v425, 4294901760
      %445 = vmatpush.msra.mxu0 %v444
      %v446 = vand.u32 %v406, 4294901760
      %447 = vmatpush.msra.mxu0 %v446
      %v448 = vand.u32 %v412, 4294901760
      %v449 = vsub.f32 %v412, %v448
      %v450 = vand.u32 %v449, 4294901760
      %v451 = vsub.f32 %v449, %v450
      %v452 = vand.u32 %v451, 4294901760
      %453 = vmatmul.f32.gmra.mxu0 %v452
      %v454 = vpop.f32.mrf.mxu0
      %v455 = vadd.f32 0.0, %v454
      %v456 = vand.u32 %v415, 4294901760
      %v457 = vsub.f32 %v415, %v456
      %v458 = vand.u32 %v457, 4294901760
      %v459 = vsub.f32 %v457, %v458
      %v460 = vand.u32 %v459, 4294901760
      %461 = vmatmul.f32.gmra.mxu0 %v460
      %v462 = vpop.f32.mrf.mxu0
      %v463 = vadd.f32 0.0, %v462
      %v464 = vand.u32 %v418, 4294901760
      %v465 = vsub.f32 %v418, %v464
      %v466 = vand.u32 %v465, 4294901760
      %v467 = vsub.f32 %v465, %v466
      %v468 = vand.u32 %v467, 4294901760
      %469 = vmatmul.f32.gmra.mxu0 %v468
      %v470 = vpop.f32.mrf.mxu0
      %v471 = vadd.f32 0.0, %v470
      %v472 = vand.u32 %v421, 4294901760
      %v473 = vsub.f32 %v421, %v472
      %v474 = vand.u32 %v473, 4294901760
      %v475 = vsub.f32 %v473, %v474
      %v476 = vand.u32 %v475, 4294901760
      %477 = vmatmul.f32.gmra.mxu0 %v476
      %v478 = vpop.f32.mrf.mxu0
      %v479 = vadd.f32 0.0, %v478
      %480 = vdwg.mxu0
      %481 = vmatpush.msra.mxu0 0.0
      %482 = vmatpush.msra.mxu0 0.0
      %483 = vmatpush.msra.mxu0 0.0
      %484 = vmatpush.msra.mxu0 0.0
      %485 = vmatpush.msra.mxu0 0.0
      %486 = vmatpush.msra.mxu0 0.0
      %487 = vmatpush.msra.mxu0 0.0
      %488 = vmatpush.msra.mxu0 0.0
      %489 = vmatpush.msra.mxu0 0.0
      %490 = vmatpush.msra.mxu0 0.0
      %491 = vmatpush.msra.mxu0 0.0
      %492 = vmatpush.msra.mxu0 0.0
      %493 = vmatpush.msra.mxu0 0.0
      %494 = vmatpush.msra.mxu0 0.0
      %v495 = vand.u32 %v425, 4294901760
      %v496 = vsub.f32 %v425, %v495
      %v497 = vand.u32 %v496, 4294901760
      %v498 = vsub.f32 %v496, %v497
      %v499 = vand.u32 %v498, 4294901760
      %500 = vmatpush.msra.mxu0 %v499
      %v501 = vand.u32 %v406, 4294901760
      %v502 = vsub.f32 %v406, %v501
      %v503 = vand.u32 %v502, 4294901760
      %v504 = vsub.f32 %v502, %v503
      %v505 = vand.u32 %v504, 4294901760
      %506 = vmatpush.msra.mxu0 %v505
      %v507 = vand.u32 %v412, 4294901760
      %508 = vmatmul.f32.gmra.mxu0 %v507
      %v509 = vpop.f32.mrf.mxu0
      %v510 = vadd.f32 %v455, %v509
      %v511 = vand.u32 %v415, 4294901760
      %512 = vmatmul.f32.gmra.mxu0 %v511
      %v513 = vpop.f32.mrf.mxu0
      %v514 = vadd.f32 %v463, %v513
      %v515 = vand.u32 %v418, 4294901760
      %516 = vmatmul.f32.gmra.mxu0 %v515
      %v517 = vpop.f32.mrf.mxu0
      %v518 = vadd.f32 %v471, %v517
      %v519 = vand.u32 %v421, 4294901760
      %520 = vmatmul.f32.gmra.mxu0 %v519
      %v521 = vpop.f32.mrf.mxu0
      %v522 = vadd.f32 %v479, %v521
      %523 = vdwg.mxu0
      %524 = vmatpush.msra.mxu0 0.0
      %525 = vmatpush.msra.mxu0 0.0
      %526 = vmatpush.msra.mxu0 0.0
      %527 = vmatpush.msra.mxu0 0.0
      %528 = vmatpush.msra.mxu0 0.0
      %529 = vmatpush.msra.mxu0 0.0
      %530 = vmatpush.msra.mxu0 0.0
      %531 = vmatpush.msra.mxu0 0.0
      %532 = vmatpush.msra.mxu0 0.0
      %533 = vmatpush.msra.mxu0 0.0
      %534 = vmatpush.msra.mxu0 0.0
      %535 = vmatpush.msra.mxu0 0.0
      %536 = vmatpush.msra.mxu0 0.0
      %537 = vmatpush.msra.mxu0 0.0
      %v538 = vand.u32 %v425, 4294901760
      %v539 = vsub.f32 %v425, %v538
      %540 = vmatpush.msra.mxu0 %v539
      %v541 = vand.u32 %v406, 4294901760
      %v542 = vsub.f32 %v406, %v541
      %543 = vmatpush.msra.mxu0 %v542
      %v544 = vand.u32 %v412, 4294901760
      %v545 = vsub.f32 %v412, %v544
      %546 = vmatmul.f32.gmra.mxu0 %v545
      %v547 = vpop.f32.mrf.mxu0
      %v548 = vadd.f32 %v510, %v547
      %v549 = vand.u32 %v415, 4294901760
      %v550 = vsub.f32 %v415, %v549
      %551 = vmatmul.f32.gmra.mxu0 %v550
      %v552 = vpop.f32.mrf.mxu0
      %v553 = vadd.f32 %v514, %v552
      %v554 = vand.u32 %v418, 4294901760
      %v555 = vsub.f32 %v418, %v554
      %556 = vmatmul.f32.gmra.mxu0 %v555
      %v557 = vpop.f32.mrf.mxu0
      %v558 = vadd.f32 %v518, %v557
      %v559 = vand.u32 %v421, 4294901760
      %v560 = vsub.f32 %v421, %v559
      %561 = vmatmul.f32.gmra.mxu0 %v560
      %v562 = vpop.f32.mrf.mxu0
      %v563 = vadd.f32 %v522, %v562
      %564 = vdwg.mxu0
      %565 = vmatpush.msra.mxu0 0.0
      %566 = vmatpush.msra.mxu0 0.0
      %567 = vmatpush.msra.mxu0 0.0
      %568 = vmatpush.msra.mxu0 0.0
      %569 = vmatpush.msra.mxu0 0.0
      %570 = vmatpush.msra.mxu0 0.0
      %571 = vmatpush.msra.mxu0 0.0
      %572 = vmatpush.msra.mxu0 0.0
      %573 = vmatpush.msra.mxu0 0.0
      %574 = vmatpush.msra.mxu0 0.0
      %575 = vmatpush.msra.mxu0 0.0
      %576 = vmatpush.msra.mxu0 0.0
      %577 = vmatpush.msra.mxu0 0.0
      %578 = vmatpush.msra.mxu0 0.0
      %v579 = vand.u32 %v425, 4294901760
      %580 = vmatpush.msra.mxu0 %v579
      %v581 = vand.u32 %v406, 4294901760
      %582 = vmatpush.msra.mxu0 %v581
      %v583 = vand.u32 %v412, 4294901760
      %v584 = vsub.f32 %v412, %v583
      %v585 = vand.u32 %v584, 4294901760
      %586 = vmatmul.f32.gmra.mxu0 %v585
      %v587 = vpop.f32.mrf.mxu0
      %v588 = vadd.f32 %v548, %v587
      %v589 = vand.u32 %v415, 4294901760
      %v590 = vsub.f32 %v415, %v589
      %v591 = vand.u32 %v590, 4294901760
      %592 = vmatmul.f32.gmra.mxu0 %v591
      %v593 = vpop.f32.mrf.mxu0
      %v594 = vadd.f32 %v553, %v593
      %v595 = vand.u32 %v418, 4294901760
      %v596 = vsub.f32 %v418, %v595
      %v597 = vand.u32 %v596, 4294901760
      %598 = vmatmul.f32.gmra.mxu0 %v597
      %v599 = vpop.f32.mrf.mxu0
      %v600 = vadd.f32 %v558, %v599
      %v601 = vand.u32 %v421, 4294901760
      %v602 = vsub.f32 %v421, %v601
      %v603 = vand.u32 %v602, 4294901760
      %604 = vmatmul.f32.gmra.mxu0 %v603
      %v605 = vpop.f32.mrf.mxu0
      %v606 = vadd.f32 %v563, %v605
      %607 = vdwg.mxu0
      %608 = vmatpush.msra.mxu0 0.0
      %609 = vmatpush.msra.mxu0 0.0
      %610 = vmatpush.msra.mxu0 0.0
      %611 = vmatpush.msra.mxu0 0.0
      %612 = vmatpush.msra.mxu0 0.0
      %613 = vmatpush.msra.mxu0 0.0
      %614 = vmatpush.msra.mxu0 0.0
      %615 = vmatpush.msra.mxu0 0.0
      %616 = vmatpush.msra.mxu0 0.0
      %617 = vmatpush.msra.mxu0 0.0
      %618 = vmatpush.msra.mxu0 0.0
      %619 = vmatpush.msra.mxu0 0.0
      %620 = vmatpush.msra.mxu0 0.0
      %621 = vmatpush.msra.mxu0 0.0
      %v622 = vand.u32 %v425, 4294901760
      %v623 = vsub.f32 %v425, %v622
      %v624 = vand.u32 %v623, 4294901760
      %625 = vmatpush.msra.mxu0 %v624
      %v626 = vand.u32 %v406, 4294901760
      %v627 = vsub.f32 %v406, %v626
      %v628 = vand.u32 %v627, 4294901760
      %629 = vmatpush.msra.mxu0 %v628
      %v630 = vand.u32 %v412, 4294901760
      %631 = vmatmul.f32.gmra.mxu0 %v630
      %v632 = vpop.f32.mrf.mxu0
      %v633 = vadd.f32 %v588, %v632
      %v634 = vand.u32 %v415, 4294901760
      %635 = vmatmul.f32.gmra.mxu0 %v634
      %v636 = vpop.f32.mrf.mxu0
      %v637 = vadd.f32 %v594, %v636
      %v638 = vand.u32 %v418, 4294901760
      %639 = vmatmul.f32.gmra.mxu0 %v638
      %v640 = vpop.f32.mrf.mxu0
      %v641 = vadd.f32 %v600, %v640
      %v642 = vand.u32 %v421, 4294901760
      %643 = vmatmul.f32.gmra.mxu0 %v642
      %v644 = vpop.f32.mrf.mxu0
      %v645 = vadd.f32 %v606, %v644
      %646 = vdwg.mxu0
      %647 = vmatpush.msra.mxu0 0.0
      %648 = vmatpush.msra.mxu0 0.0
      %649 = vmatpush.msra.mxu0 0.0
      %650 = vmatpush.msra.mxu0 0.0
      %651 = vmatpush.msra.mxu0 0.0
      %652 = vmatpush.msra.mxu0 0.0
      %653 = vmatpush.msra.mxu0 0.0
      %654 = vmatpush.msra.mxu0 0.0
      %655 = vmatpush.msra.mxu0 0.0
      %656 = vmatpush.msra.mxu0 0.0
      %657 = vmatpush.msra.mxu0 0.0
      %658 = vmatpush.msra.mxu0 0.0
      %659 = vmatpush.msra.mxu0 0.0
      %660 = vmatpush.msra.mxu0 0.0
      %v661 = vand.u32 %v425, 4294901760
      %662 = vmatpush.msra.mxu0 %v661
      %v663 = vand.u32 %v406, 4294901760
      %664 = vmatpush.msra.mxu0 %v663
      %v665 = vand.u32 %v412, 4294901760
      %666 = vmatmul.f32.gmra.mxu0 %v665
      %v667 = vpop.f32.mrf.mxu0
      %v668 = vadd.f32 %v633, %v667
      %v669 = vand.u32 %v415, 4294901760
      %670 = vmatmul.f32.gmra.mxu0 %v669
      %v671 = vpop.f32.mrf.mxu0
      %v672 = vadd.f32 %v637, %v671
      %v673 = vand.u32 %v418, 4294901760
      %674 = vmatmul.f32.gmra.mxu0 %v673
      %v675 = vpop.f32.mrf.mxu0
      %v676 = vadd.f32 %v641, %v675
      %v677 = vand.u32 %v421, 4294901760
      %678 = vmatmul.f32.gmra.mxu0 %v677
      %v679 = vpop.f32.mrf.mxu0
      %v680 = vadd.f32 %v645, %v679
      %681 = vdwg.mxu0
      %682 = vmatpush.msra.mxu0 0.0
      %683 = vmatpush.msra.mxu0 0.0
      %684 = vmatpush.msra.mxu0 0.0
      %685 = vmatpush.msra.mxu0 0.0
      %686 = vmatpush.msra.mxu0 0.0
      %687 = vmatpush.msra.mxu0 0.0
      %688 = vmatpush.msra.mxu0 0.0
      %689 = vmatpush.msra.mxu0 0.0
      %690 = vmatpush.msra.mxu0 0.0
      %691 = vmatpush.msra.mxu0 0.0
      %692 = vmatpush.msra.mxu0 0.0
      %693 = vmatpush.msra.mxu0 0.0
      %694 = vmatpush.msra.mxu0 0.0
      %695 = vmatpush.msra.mxu0 0.0
      %v696 = vand.u32 %v428, 4294901760
      %697 = vmatpush.msra.mxu0 %v696
      %v698 = vand.u32 %v407, 4294901760
      %699 = vmatpush.msra.mxu0 %v698
      %v700 = vand.u32 %v412, 4294901760
      %v701 = vsub.f32 %v412, %v700
      %v702 = vand.u32 %v701, 4294901760
      %v703 = vsub.f32 %v701, %v702
      %v704 = vand.u32 %v703, 4294901760
      %705 = vmatmul.f32.gmra.mxu0 %v704
      %v706 = vpop.f32.mrf.mxu0
      %v707 = vadd.f32 0.0, %v706
      %v708 = vand.u32 %v415, 4294901760
      %v709 = vsub.f32 %v415, %v708
      %v710 = vand.u32 %v709, 4294901760
      %v711 = vsub.f32 %v709, %v710
      %v712 = vand.u32 %v711, 4294901760
      %713 = vmatmul.f32.gmra.mxu0 %v712
      %v714 = vpop.f32.mrf.mxu0
      %v715 = vadd.f32 0.0, %v714
      %v716 = vand.u32 %v418, 4294901760
      %v717 = vsub.f32 %v418, %v716
      %v718 = vand.u32 %v717, 4294901760
      %v719 = vsub.f32 %v717, %v718
      %v720 = vand.u32 %v719, 4294901760
      %721 = vmatmul.f32.gmra.mxu0 %v720
      %v722 = vpop.f32.mrf.mxu0
      %v723 = vadd.f32 0.0, %v722
      %v724 = vand.u32 %v421, 4294901760
      %v725 = vsub.f32 %v421, %v724
      %v726 = vand.u32 %v725, 4294901760
      %v727 = vsub.f32 %v725, %v726
      %v728 = vand.u32 %v727, 4294901760
      %729 = vmatmul.f32.gmra.mxu0 %v728
      %v730 = vpop.f32.mrf.mxu0
      %v731 = vadd.f32 0.0, %v730
      %732 = vdwg.mxu0
      %733 = vmatpush.msra.mxu0 0.0
      %734 = vmatpush.msra.mxu0 0.0
      %735 = vmatpush.msra.mxu0 0.0
      %736 = vmatpush.msra.mxu0 0.0
      %737 = vmatpush.msra.mxu0 0.0
      %738 = vmatpush.msra.mxu0 0.0
      %739 = vmatpush.msra.mxu0 0.0
      %740 = vmatpush.msra.mxu0 0.0
      %741 = vmatpush.msra.mxu0 0.0
      %742 = vmatpush.msra.mxu0 0.0
      %743 = vmatpush.msra.mxu0 0.0
      %744 = vmatpush.msra.mxu0 0.0
      %745 = vmatpush.msra.mxu0 0.0
      %746 = vmatpush.msra.mxu0 0.0
      %v747 = vand.u32 %v428, 4294901760
      %v748 = vsub.f32 %v428, %v747
      %v749 = vand.u32 %v748, 4294901760
      %v750 = vsub.f32 %v748, %v749
      %v751 = vand.u32 %v750, 4294901760
      %752 = vmatpush.msra.mxu0 %v751
      %v753 = vand.u32 %v407, 4294901760
      %v754 = vsub.f32 %v407, %v753
      %v755 = vand.u32 %v754, 4294901760
      %v756 = vsub.f32 %v754, %v755
      %v757 = vand.u32 %v756, 4294901760
      %758 = vmatpush.msra.mxu0 %v757
      %v759 = vand.u32 %v412, 4294901760
      %760 = vmatmul.f32.gmra.mxu0 %v759
      %v761 = vpop.f32.mrf.mxu0
      %v762 = vadd.f32 %v707, %v761
      %v763 = vand.u32 %v415, 4294901760
      %764 = vmatmul.f32.gmra.mxu0 %v763
      %v765 = vpop.f32.mrf.mxu0
      %v766 = vadd.f32 %v715, %v765
      %v767 = vand.u32 %v418, 4294901760
      %768 = vmatmul.f32.gmra.mxu0 %v767
      %v769 = vpop.f32.mrf.mxu0
      %v770 = vadd.f32 %v723, %v769
      %v771 = vand.u32 %v421, 4294901760
      %772 = vmatmul.f32.gmra.mxu0 %v771
      %v773 = vpop.f32.mrf.mxu0
      %v774 = vadd.f32 %v731, %v773
      %775 = vdwg.mxu0
      %776 = vmatpush.msra.mxu0 0.0
      %777 = vmatpush.msra.mxu0 0.0
      %778 = vmatpush.msra.mxu0 0.0
      %779 = vmatpush.msra.mxu0 0.0
      %780 = vmatpush.msra.mxu0 0.0
      %781 = vmatpush.msra.mxu0 0.0
      %782 = vmatpush.msra.mxu0 0.0
      %783 = vmatpush.msra.mxu0 0.0
      %784 = vmatpush.msra.mxu0 0.0
      %785 = vmatpush.msra.mxu0 0.0
      %786 = vmatpush.msra.mxu0 0.0
      %787 = vmatpush.msra.mxu0 0.0
      %788 = vmatpush.msra.mxu0 0.0
      %789 = vmatpush.msra.mxu0 0.0
      %v790 = vand.u32 %v428, 4294901760
      %v791 = vsub.f32 %v428, %v790
      %792 = vmatpush.msra.mxu0 %v791
      %v793 = vand.u32 %v407, 4294901760
      %v794 = vsub.f32 %v407, %v793
      %795 = vmatpush.msra.mxu0 %v794
      %v796 = vand.u32 %v412, 4294901760
      %v797 = vsub.f32 %v412, %v796
      %798 = vmatmul.f32.gmra.mxu0 %v797
      %v799 = vpop.f32.mrf.mxu0
      %v800 = vadd.f32 %v762, %v799
      %v801 = vand.u32 %v415, 4294901760
      %v802 = vsub.f32 %v415, %v801
      %803 = vmatmul.f32.gmra.mxu0 %v802
      %v804 = vpop.f32.mrf.mxu0
      %v805 = vadd.f32 %v766, %v804
      %v806 = vand.u32 %v418, 4294901760
      %v807 = vsub.f32 %v418, %v806
      %808 = vmatmul.f32.gmra.mxu0 %v807
      %v809 = vpop.f32.mrf.mxu0
      %v810 = vadd.f32 %v770, %v809
      %v811 = vand.u32 %v421, 4294901760
      %v812 = vsub.f32 %v421, %v811
      %813 = vmatmul.f32.gmra.mxu0 %v812
      %v814 = vpop.f32.mrf.mxu0
      %v815 = vadd.f32 %v774, %v814
      %816 = vdwg.mxu0
      %817 = vmatpush.msra.mxu0 0.0
      %818 = vmatpush.msra.mxu0 0.0
      %819 = vmatpush.msra.mxu0 0.0
      %820 = vmatpush.msra.mxu0 0.0
      %821 = vmatpush.msra.mxu0 0.0
      %822 = vmatpush.msra.mxu0 0.0
      %823 = vmatpush.msra.mxu0 0.0
      %824 = vmatpush.msra.mxu0 0.0
      %825 = vmatpush.msra.mxu0 0.0
      %826 = vmatpush.msra.mxu0 0.0
      %827 = vmatpush.msra.mxu0 0.0
      %828 = vmatpush.msra.mxu0 0.0
      %829 = vmatpush.msra.mxu0 0.0
      %830 = vmatpush.msra.mxu0 0.0
      %v831 = vand.u32 %v428, 4294901760
      %832 = vmatpush.msra.mxu0 %v831
      %v833 = vand.u32 %v407, 4294901760
      %834 = vmatpush.msra.mxu0 %v833
      %v835 = vand.u32 %v412, 4294901760
      %v836 = vsub.f32 %v412, %v835
      %v837 = vand.u32 %v836, 4294901760
      %838 = vmatmul.f32.gmra.mxu0 %v837
      %v839 = vpop.f32.mrf.mxu0
      %v840 = vadd.f32 %v800, %v839
      %v841 = vand.u32 %v415, 4294901760
      %v842 = vsub.f32 %v415, %v841
      %v843 = vand.u32 %v842, 4294901760
      %844 = vmatmul.f32.gmra.mxu0 %v843
      %v845 = vpop.f32.mrf.mxu0
      %v846 = vadd.f32 %v805, %v845
      %v847 = vand.u32 %v418, 4294901760
      %v848 = vsub.f32 %v418, %v847
      %v849 = vand.u32 %v848, 4294901760
      %850 = vmatmul.f32.gmra.mxu0 %v849
      %v851 = vpop.f32.mrf.mxu0
      %v852 = vadd.f32 %v810, %v851
      %v853 = vand.u32 %v421, 4294901760
      %v854 = vsub.f32 %v421, %v853
      %v855 = vand.u32 %v854, 4294901760
      %856 = vmatmul.f32.gmra.mxu0 %v855
      %v857 = vpop.f32.mrf.mxu0
      %v858 = vadd.f32 %v815, %v857
      %859 = vdwg.mxu0
      %860 = vmatpush.msra.mxu0 0.0
      %861 = vmatpush.msra.mxu0 0.0
      %862 = vmatpush.msra.mxu0 0.0
      %863 = vmatpush.msra.mxu0 0.0
      %864 = vmatpush.msra.mxu0 0.0
      %865 = vmatpush.msra.mxu0 0.0
      %866 = vmatpush.msra.mxu0 0.0
      %867 = vmatpush.msra.mxu0 0.0
      %868 = vmatpush.msra.mxu0 0.0
      %869 = vmatpush.msra.mxu0 0.0
      %870 = vmatpush.msra.mxu0 0.0
      %871 = vmatpush.msra.mxu0 0.0
      %872 = vmatpush.msra.mxu0 0.0
      %873 = vmatpush.msra.mxu0 0.0
      %v874 = vand.u32 %v428, 4294901760
      %v875 = vsub.f32 %v428, %v874
      %v876 = vand.u32 %v875, 4294901760
      %877 = vmatpush.msra.mxu0 %v876
      %v878 = vand.u32 %v407, 4294901760
      %v879 = vsub.f32 %v407, %v878
      %v880 = vand.u32 %v879, 4294901760
      %881 = vmatpush.msra.mxu0 %v880
      %v882 = vand.u32 %v412, 4294901760
      %883 = vmatmul.f32.gmra.mxu0 %v882
      %v884 = vpop.f32.mrf.mxu0
      %v885 = vadd.f32 %v840, %v884
      %v886 = vand.u32 %v415, 4294901760
      %887 = vmatmul.f32.gmra.mxu0 %v886
      %v888 = vpop.f32.mrf.mxu0
      %v889 = vadd.f32 %v846, %v888
      %v890 = vand.u32 %v418, 4294901760
      %891 = vmatmul.f32.gmra.mxu0 %v890
      %v892 = vpop.f32.mrf.mxu0
      %v893 = vadd.f32 %v852, %v892
      %v894 = vand.u32 %v421, 4294901760
      %895 = vmatmul.f32.gmra.mxu0 %v894
      %v896 = vpop.f32.mrf.mxu0
      %v897 = vadd.f32 %v858, %v896
      %898 = vdwg.mxu0
      %899 = vmatpush.msra.mxu0 0.0
      %900 = vmatpush.msra.mxu0 0.0
      %901 = vmatpush.msra.mxu0 0.0
      %902 = vmatpush.msra.mxu0 0.0
      %903 = vmatpush.msra.mxu0 0.0
      %904 = vmatpush.msra.mxu0 0.0
      %905 = vmatpush.msra.mxu0 0.0
      %906 = vmatpush.msra.mxu0 0.0
      %907 = vmatpush.msra.mxu0 0.0
      %908 = vmatpush.msra.mxu0 0.0
      %909 = vmatpush.msra.mxu0 0.0
      %910 = vmatpush.msra.mxu0 0.0
      %911 = vmatpush.msra.mxu0 0.0
      %912 = vmatpush.msra.mxu0 0.0
      %v913 = vand.u32 %v428, 4294901760
      %914 = vmatpush.msra.mxu0 %v913
      %v915 = vand.u32 %v407, 4294901760
      %916 = vmatpush.msra.mxu0 %v915
      %v917 = vand.u32 %v412, 4294901760
      %918 = vmatmul.f32.gmra.mxu0 %v917
      %v919 = vpop.f32.mrf.mxu0
      %v920 = vadd.f32 %v885, %v919
      %v921 = vand.u32 %v415, 4294901760
      %922 = vmatmul.f32.gmra.mxu0 %v921
      %v923 = vpop.f32.mrf.mxu0
      %v924 = vadd.f32 %v889, %v923
      %v925 = vand.u32 %v418, 4294901760
      %926 = vmatmul.f32.gmra.mxu0 %v925
      %v927 = vpop.f32.mrf.mxu0
      %v928 = vadd.f32 %v893, %v927
      %v929 = vand.u32 %v421, 4294901760
      %930 = vmatmul.f32.gmra.mxu0 %v929
      %v931 = vpop.f32.mrf.mxu0
      %v932 = vadd.f32 %v897, %v931
      %933 = vdwg.mxu0
      %934 = vst [vmem:[%s287] sm:$0xff] %v668
      %935 = vst [vmem:[%s287 + $0x8] sm:$0xff] %v920
      %936 = vst [vmem:[%s287 + $0x10] sm:$0xff] %v672
      %937 = vst [vmem:[%s287 + $0x18] sm:$0xff] %v924
      %938 = vst [vmem:[%s287 + $0x20] sm:$0xff] %v676
      %939 = vst [vmem:[%s287 + $0x28] sm:$0xff] %v928
      %940 = vst [vmem:[%s287 + $0x30] sm:$0xff] %v680
      %941 = vst [vmem:[%s287 + $0x38] sm:$0xff] %v932
      %s942 = smul.u32 2, %s20
      %p943 = scmp.lt.s32.totalorder %s19, 1
      %s944 = scalar_select %p943, %s19, 1
      %p945 = scmp.lt.s32.totalorder %s942, 1
      %s946 = scalar_select %p945, %s942, 1
      %s947 = smul.addr %s944, 8
      %s948 = sadd.s32 %s946, %s947
      %s949 = smul.addr %s948, 8
      %s950 = scalar_lea.vmem %s4, %s949
      // Predicated region
      $region37: #{si_forward.1} parent=35 // pred_check
        %p951 = pneg %p152
      $region38: #{si_forward.1} parent=35 // pred_check_branch
        %953 = sbr.rel (%p951) target = $region40
      $region39: #{si_forward.1} parent=35 // pred_region
        %s954 = smul.u32 2, %s20
      $region40: #{si_forward.1} parent=35 // pred_fallthru
        _
    $region36: #{si_forward.1} parent=5 // pred_fallthru
      _
    %p955 = scmp.le.s32.totalorder 2, %s10
    // Predicated region
    $region41: #{si_forward.1} parent=5 // pred_check
      %p956 = pneg %p955
    $region42: #{si_forward.1} parent=5 // pred_check_branch
      %958 = sbr.rel (%p956) target = $region44
    $region43: #{si_forward.1} parent=5 // pred_region
      %s959 = ssub.s32 %s10, 2
      // Predicated region
      $region45: #{si_forward.1} parent=43 // pred_check
        %p960 = pneg %p158
      $region46: #{si_forward.1} parent=43 // pred_check_branch
        %962 = sbr.rel (%p960) target = $region48
      $region47: #{si_forward.1} parent=43 // pred_region
        %s963 = smul.u32 2, %s22
        %p964 = scmp.lt.s32.totalorder %s21, 1
        %s965 = scalar_select %p964, %s21, 1
        %p966 = scmp.lt.s32.totalorder %s963, 1
        %s967 = scalar_select %p966, %s963, 1
        %s968 = smul.addr %s965, 8
        %s969 = sadd.s32 %s967, %s968
        %s970 = smul.addr %s969, 8
        %s971 = scalar_lea.vmem %s4, %s970
      $region48: #{si_forward.1} parent=43 // pred_fallthru
        _
    $region44: #{si_forward.1} parent=5 // pred_fallthru
      _
  $region6: #{si_forward.1} parent=0 // loop_footer
    %s14 = sadd.s32 1, %s10
  $region7: #{si_forward.1} parent=0 // loop_footer_branch
    %9 = sbr.rel target = $region3
  $region8: #{si_forward.1} parent=0 // loop_exit
    _

</llo_original>
